<compile_context>
chip_gen: v5e
topology: v5e:2x2
jax: 0.10.0
libtpu: 0.0.40
codegen_flags: <defaults>
</compile_context>

<pallas_src>
import jax
import jax.numpy as jnp
from jax.experimental import pallas as pl
from jax.experimental.pallas import tpu as pltpu


def fuse_block_kernel(x_ref, res_ref, gw_ref, bw_ref, aw_ref,
                      bn_scale_ref, bn_shift_ref, ag1_ref, ab_ref, out_ref):
    # x_ref:   (TB, Cx,   HW)
    # res_ref: (TB, Cres, HW)
    # gw/bw:   (Cres, Cx)         1x1 conv weights
    # aw:      (Cres, 1)          alpha 1x1 conv weight (as a column)
    # bn_scale/bn_shift/ag1/ab: (Cres, 1) per-channel constants
    tb = x_ref.shape[0]

    # Hoist all small per-channel constants / weights out of the batch loop.
    gw = gw_ref[...]
    bw = bw_ref[...]
    aw = aw_ref[...]
    bn_scale = bn_scale_ref[...]
    bn_shift = bn_shift_ref[...]
    ag1 = ag1_ref[...]
    ab = ab_ref[...]

    for b in range(tb):                      # TB is a small static constant
        xb = x_ref[b]                        # (Cx, HW)
        rb = res_ref[b]                      # (Cres, HW)

        # BatchNorm (eval, affine=False) folded to scale/shift.
        res_n = rb * bn_scale + bn_shift     # (Cres, HW)

        # 1x1 convs as lane-dense MXU matmuls.
        gamma = jnp.dot(gw, xb, preferred_element_type=jnp.float32) + 1.0
        beta = jnp.dot(bw, xb, preferred_element_type=jnp.float32)

        # alpha conv has a single output channel: do it on the VPU/XLU
        # (broadcast-multiply + sublane reduce) instead of an M=1 matvec.
        alpha = jax.nn.sigmoid(
            jnp.sum((aw * res_n).astype(jnp.float32), axis=0, keepdims=True)
        )                                    # (1, HW)

        out0 = res_n * gamma + beta
        out1 = res_n * ag1 + ab
        # Single fused, lane-dense store (keeps the v5e store slot unmasked).
        out_ref[b] = ((1.0 - alpha) * out0 + alpha * out1).astype(out_ref.dtype)


def _pick_batch_tile(batch, per_batch_bytes, target_bytes=2 << 20):
    """Largest divisor of `batch` whose streamed tile stays under ~target."""
    tb = 1
    limit = max(target_bytes, per_batch_bytes)
    for d in range(1, batch + 1):
        if batch % d == 0 and d * per_batch_bytes <= limit:
            tb = d
    return tb


def fuse_block_forward(x, res, gamma_w, beta_w, alpha_w,
                       affine_gamma, affine_beta, bn_mean, bn_var, eps=1e-5):
    """x: (B, Cx, H, W), res: (B, Cres, H, W) NCHW.
    gamma_w/beta_w: (Cres, Cx); alpha_w: (1, Cres);
    affine_gamma/affine_beta/bn_mean/bn_var: (Cres,)."""
    B, Cx, H, W = x.shape
    Bs, Cres, Hs, Ws = res.shape
    assert (Bs, Hs, Ws) == (B, H, W)
    assert gamma_w.shape == (Cres, Cx) and beta_w.shape == (Cres, Cx)
    assert alpha_w.shape == (1, Cres)
    HW = H * W

    xr = x.reshape(B, Cx, HW)
    rr = res.reshape(B, Cres, HW)

    # Fold eval-mode BatchNorm (affine=False) into per-channel scale/shift.
    bn_scale = (1.0 / jnp.sqrt(bn_var + eps)).astype(jnp.float32)
    bn_shift = (-bn_mean.astype(jnp.float32) * bn_scale)
    bn_scale = bn_scale.reshape(Cres, 1)
    bn_shift = bn_shift.reshape(Cres, 1)
    ag1 = (affine_gamma.reshape(Cres, 1) + 1.0).astype(jnp.float32)
    ab = affine_beta.reshape(Cres, 1).astype(jnp.float32)
    aw_col = alpha_w.reshape(Cres, 1)

    # ---- Tiling: batch several batch elements per grid step (~2 MiB/step).
    itemsize = x.dtype.itemsize
    per_batch_bytes = (Cx + 2 * Cres) * HW * itemsize   # x + res + out streams
    TB = _pick_batch_tile(B, per_batch_bytes)
    grid = (B // TB,)

    # ---- Scoped VMEM budget: double-buffered streams + f32 intermediates.
    tile_stream_bytes = TB * per_batch_bytes
    vmem_limit = int(min(max(2 * tile_stream_bytes + 8 * Cres * HW * 4 + (2 << 20),
                             4 << 20),
                         64 << 20))

    # ---- Advisory cost estimate (kernel is HBM-bandwidth bound).
    flops = int(B * HW * (4 * Cres * Cx + 2 * Cres + 10 * Cres))
    bytes_accessed = int((B * Cx * HW + 2 * B * Cres * HW) * itemsize)
    cost = pl.CostEstimate(flops=flops, transcendentals=int(B * HW),
                           bytes_accessed=bytes_accessed)

    out = pl.pallas_call(
        fuse_block_kernel,
        out_shape=jax.ShapeDtypeStruct((B, Cres, HW), x.dtype),
        grid_spec=pltpu.PrefetchScalarGridSpec(
            num_scalar_prefetch=0,
            grid=grid,
            in_specs=[
                pl.BlockSpec((TB, Cx, HW), lambda i: (i, 0, 0)),
                pl.BlockSpec((TB, Cres, HW), lambda i: (i, 0, 0)),
                pl.BlockSpec((Cres, Cx), lambda i: (0, 0)),
                pl.BlockSpec((Cres, Cx), lambda i: (0, 0)),
                pl.BlockSpec((Cres, 1), lambda i: (0, 0)),
                pl.BlockSpec((Cres, 1), lambda i: (0, 0)),
                pl.BlockSpec((Cres, 1), lambda i: (0, 0)),
                pl.BlockSpec((Cres, 1), lambda i: (0, 0)),
                pl.BlockSpec((Cres, 1), lambda i: (0, 0)),
            ],
            out_specs=pl.BlockSpec((TB, Cres, HW), lambda i: (i, 0, 0)),
        ),
        compiler_params=pltpu.CompilerParams(
            dimension_semantics=("parallel",),
            vmem_limit_bytes=vmem_limit,
        ),
        cost_estimate=cost,
    )(xr, rr, gamma_w, beta_w, aw_col, bn_scale, bn_shift, ag1, ab)

    return out.reshape(B, Cres, H, W)


def fuse_block_ref(x, res, gamma_w, beta_w, alpha_w,
                   affine_gamma, affine_beta, bn_mean, bn_var, eps=1e-5):
    """Pure-JAX reference mirroring the PyTorch eval-mode forward."""
    hp = jax.lax.Precision.HIGHEST
    res_n = (res - bn_mean[None, :, None, None]) / jnp.sqrt(
        bn_var[None, :, None, None] + eps)
    gamma = jnp.einsum('oc,bchw->bohw', gamma_w, x, precision=hp) + 1.0
    beta = jnp.einsum('oc,bchw->bohw', beta_w, x, precision=hp)
    out0 = res_n * gamma + beta
    out1 = (res_n * (affine_gamma[None, :, None, None] + 1.0)
            + affine_beta[None, :, None, None])
    alpha = jax.nn.sigmoid(
        jnp.einsum('oc,bchw->bohw', alpha_w, res_n, precision=hp))
    return (1.0 - alpha) * out0 + alpha * out1


if __name__ == "__main__":
    B, x_dim, res_dim, H, W = 2, 8, 16, 16, 16      # HW = 256 (multiple of 128)

    key = jax.random.PRNGKey(0)
    ks = jax.random.split(key, 9)
    x = jax.random.normal(ks[0], (B, x_dim, H, W), dtype=jnp.float32)
    res = jax.random.normal(ks[1], (B, res_dim, H, W), dtype=jnp.float32)
    # Synthetic (nonzero) weights so the test exercises every term; the real
    # module initializes gamma/beta/affine params to zero.
    gamma_w = jax.random.normal(ks[2], (res_dim, x_dim), jnp.float32) / jnp.sqrt(x_dim)
    beta_w = jax.random.normal(ks[3], (res_dim, x_dim), jnp.float32) / jnp.sqrt(x_dim)
    alpha_w = jax.random.normal(ks[4], (1, res_dim), jnp.float32) / jnp.sqrt(res_dim)
    affine_gamma = 0.1 * jax.random.normal(ks[5], (res_dim,), jnp.float32)
    affine_beta = 0.1 * jax.random.normal(ks[6], (res_dim,), jnp.float32)
    bn_mean = jax.random.normal(ks[7], (res_dim,), jnp.float32)
    bn_var = jax.random.uniform(ks[8], (res_dim,), jnp.float32, 0.5, 1.5)

    out = fuse_block_forward(x, res, gamma_w, beta_w, alpha_w,
                             affine_gamma, affine_beta, bn_mean, bn_var)
    out = jax.block_until_ready(out)

    ref = fuse_block_ref(x, res, gamma_w, beta_w, alpha_w,
                         affine_gamma, affine_beta, bn_mean, bn_var)
    assert out.shape == (B, res_dim, H, W)
    assert jnp.allclose(out, ref, atol=1e-4, rtol=1e-4), "mismatch vs reference"

    print("KERNEL_OK")
</pallas_src>

<mosaic_0001>
module attributes {stable_mosaic.version = 11 : i64} {
  func.func @fuse_block_kernel(%arg0: i32, %arg1: memref<2x8x256xf32, #tpu.memory_space<vmem>>, %arg2: memref<2x16x256xf32, #tpu.memory_space<vmem>>, %arg3: memref<16x8xf32, #tpu.memory_space<vmem>>, %arg4: memref<16x8xf32, #tpu.memory_space<vmem>>, %arg5: memref<16x1xf32, #tpu.memory_space<vmem>>, %arg6: memref<16x1xf32, #tpu.memory_space<vmem>>, %arg7: memref<16x1xf32, #tpu.memory_space<vmem>>, %arg8: memref<16x1xf32, #tpu.memory_space<vmem>>, %arg9: memref<16x1xf32, #tpu.memory_space<vmem>>, %arg10: memref<2x16x256xf32, #tpu.memory_space<vmem>>) attributes {dimension_semantics = [#tpu.dimension_semantics<parallel>], iteration_bounds = array<i64: 1>, scalar_prefetch = 0 : i64, scratch_operands = 0 : i64, tpu.core_type = #tpu.core_type<tc>, window_params = [{transform_indices = @transform_0, window_bounds = array<i64: 2, 8, 256>}, {transform_indices = @transform_1, window_bounds = array<i64: 2, 16, 256>}, {pipeline_mode = #tpu.pipeline_mode<synchronous>, transform_indices = @transform_2, window_bounds = array<i64: 16, 8>}, {pipeline_mode = #tpu.pipeline_mode<synchronous>, transform_indices = @transform_3, window_bounds = array<i64: 16, 8>}, {pipeline_mode = #tpu.pipeline_mode<synchronous>, transform_indices = @transform_4, window_bounds = array<i64: 16, 1>}, {pipeline_mode = #tpu.pipeline_mode<synchronous>, transform_indices = @transform_5, window_bounds = array<i64: 16, 1>}, {pipeline_mode = #tpu.pipeline_mode<synchronous>, transform_indices = @transform_6, window_bounds = array<i64: 16, 1>}, {pipeline_mode = #tpu.pipeline_mode<synchronous>, transform_indices = @transform_7, window_bounds = array<i64: 16, 1>}, {pipeline_mode = #tpu.pipeline_mode<synchronous>, transform_indices = @transform_8, window_bounds = array<i64: 16, 1>}, {transform_indices = @transform_9, window_bounds = array<i64: 2, 16, 256>}]} {
    %c0 = arith.constant 0 : index
    %c0_0 = arith.constant 0 : index
    %0 = vector.load %arg3[%c0, %c0_0] : memref<16x8xf32, #tpu.memory_space<vmem>>, vector<16x8xf32>
    %c0_1 = arith.constant 0 : index
    %c0_2 = arith.constant 0 : index
    %1 = vector.load %arg4[%c0_1, %c0_2] : memref<16x8xf32, #tpu.memory_space<vmem>>, vector<16x8xf32>
    %c0_3 = arith.constant 0 : index
    %c0_4 = arith.constant 0 : index
    %2 = vector.load %arg5[%c0_3, %c0_4] : memref<16x1xf32, #tpu.memory_space<vmem>>, vector<16x1xf32>
    %c0_5 = arith.constant 0 : index
    %c0_6 = arith.constant 0 : index
    %3 = vector.load %arg6[%c0_5, %c0_6] : memref<16x1xf32, #tpu.memory_space<vmem>>, vector<16x1xf32>
    %c0_7 = arith.constant 0 : index
    %c0_8 = arith.constant 0 : index
    %4 = vector.load %arg7[%c0_7, %c0_8] : memref<16x1xf32, #tpu.memory_space<vmem>>, vector<16x1xf32>
    %c0_9 = arith.constant 0 : index
    %c0_10 = arith.constant 0 : index
    %5 = vector.load %arg8[%c0_9, %c0_10] : memref<16x1xf32, #tpu.memory_space<vmem>>, vector<16x1xf32>
    %c0_11 = arith.constant 0 : index
    %c0_12 = arith.constant 0 : index
    %6 = vector.load %arg9[%c0_11, %c0_12] : memref<16x1xf32, #tpu.memory_space<vmem>>, vector<16x1xf32>
    %c0_13 = arith.constant 0 : index
    %c0_14 = arith.constant 0 : index
    %c0_15 = arith.constant 0 : index
    %7 = vector.load %arg1[%c0_13, %c0_14, %c0_15] : memref<2x8x256xf32, #tpu.memory_space<vmem>>, vector<1x8x256xf32>
    %8 = vector.shape_cast %7 : vector<1x8x256xf32> to vector<8x256xf32>
    %c0_16 = arith.constant 0 : index
    %c0_17 = arith.constant 0 : index
    %c0_18 = arith.constant 0 : index
    %9 = vector.load %arg2[%c0_16, %c0_17, %c0_18] : memref<2x16x256xf32, #tpu.memory_space<vmem>>, vector<1x16x256xf32>
    %10 = vector.shape_cast %9 : vector<1x16x256xf32> to vector<16x256xf32>
    %11 = vector.broadcast %3 : vector<16x1xf32> to vector<16x256xf32>
    %12 = arith.mulf %10, %11 : vector<16x256xf32>
    %13 = vector.broadcast %4 : vector<16x1xf32> to vector<16x256xf32>
    %14 = arith.addf %12, %13 : vector<16x256xf32>
    %cst = arith.constant dense<0.000000e+00> : vector<16x256xf32>
    %15 = tpu.matmul %0, %8, %cst {dimension_numbers = #tpu.dot_dimension_numbers<[1], [0], [0], [1], [0, 0, 1, 1], [], []>} : vector<16x8xf32>, vector<8x256xf32>, vector<16x256xf32> -> vector<16x256xf32>
    %cst_19 = arith.constant 1.000000e+00 : f32
    %16 = vector.broadcast %cst_19 : f32 to vector<16x256xf32>
    %17 = arith.addf %15, %16 : vector<16x256xf32>
    %cst_20 = arith.constant dense<0.000000e+00> : vector<16x256xf32>
    %18 = tpu.matmul %1, %8, %cst_20 {dimension_numbers = #tpu.dot_dimension_numbers<[1], [0], [0], [1], [0, 0, 1, 1], [], []>} : vector<16x8xf32>, vector<8x256xf32>, vector<16x256xf32> -> vector<16x256xf32>
    %19 = vector.broadcast %2 : vector<16x1xf32> to vector<16x256xf32>
    %20 = arith.mulf %19, %14 : vector<16x256xf32>
    %cst_21 = arith.constant dense<0.000000e+00> : vector<256xf32>
    %21 = vector.multi_reduction <add>, %20, %cst_21 [0] : vector<16x256xf32> to vector<256xf32>
    %22 = vector.shape_cast %21 : vector<256xf32> to vector<1x256xf32>
    %23 = arith.negf %22 : vector<1x256xf32>
    %24 = math.exp %23 : vector<1x256xf32>
    %cst_22 = arith.constant 1.000000e+00 : f32
    %25 = vector.broadcast %cst_22 : f32 to vector<1x256xf32>
    %26 = arith.addf %25, %24 : vector<1x256xf32>
    %27 = arith.divf %25, %26 : vector<1x256xf32>
    %28 = arith.mulf %14, %17 : vector<16x256xf32>
    %29 = arith.addf %28, %18 : vector<16x256xf32>
    %30 = vector.broadcast %5 : vector<16x1xf32> to vector<16x256xf32>
    %31 = arith.mulf %14, %30 : vector<16x256xf32>
    %32 = vector.broadcast %6 : vector<16x1xf32> to vector<16x256xf32>
    %33 = arith.addf %31, %32 : vector<16x256xf32>
    %cst_23 = arith.constant 1.000000e+00 : f32
    %34 = vector.broadcast %cst_23 : f32 to vector<1x256xf32>
    %35 = arith.subf %34, %27 : vector<1x256xf32>
    %36 = vector.broadcast %35 : vector<1x256xf32> to vector<16x256xf32>
    %37 = arith.mulf %36, %29 : vector<16x256xf32>
    %38 = vector.broadcast %27 : vector<1x256xf32> to vector<16x256xf32>
    %39 = arith.mulf %38, %33 : vector<16x256xf32>
    %40 = arith.addf %37, %39 : vector<16x256xf32>
    %c0_24 = arith.constant 0 : index
    %c0_25 = arith.constant 0 : index
    %c0_26 = arith.constant 0 : index
    %41 = vector.load %arg10[%c0_24, %c0_25, %c0_26] : memref<2x16x256xf32, #tpu.memory_space<vmem>>, vector<1x16x256xf32>
    %42 = vector.shape_cast %41 : vector<1x16x256xf32> to vector<16x256xf32>
    %43 = vector.shape_cast %40 : vector<16x256xf32> to vector<1x16x256xf32>
    tpu.vector_store %arg10[%c0_24, %c0_25, %c0_26], %43 {strides = array<i32>} : memref<2x16x256xf32, #tpu.memory_space<vmem>>, vector<1x16x256xf32>,
    %c1 = arith.constant 1 : index
    %c0_27 = arith.constant 0 : index
    %c0_28 = arith.constant 0 : index
    %44 = vector.load %arg1[%c1, %c0_27, %c0_28] : memref<2x8x256xf32, #tpu.memory_space<vmem>>, vector<1x8x256xf32>
    %45 = vector.shape_cast %44 : vector<1x8x256xf32> to vector<8x256xf32>
    %c1_29 = arith.constant 1 : index
    %c0_30 = arith.constant 0 : index
    %c0_31 = arith.constant 0 : index
    %46 = vector.load %arg2[%c1_29, %c0_30, %c0_31] : memref<2x16x256xf32, #tpu.memory_space<vmem>>, vector<1x16x256xf32>
    %47 = vector.shape_cast %46 : vector<1x16x256xf32> to vector<16x256xf32>
    %48 = vector.broadcast %3 : vector<16x1xf32> to vector<16x256xf32>
    %49 = arith.mulf %47, %48 : vector<16x256xf32>
    %50 = vector.broadcast %4 : vector<16x1xf32> to vector<16x256xf32>
    %51 = arith.addf %49, %50 : vector<16x256xf32>
    %cst_32 = arith.constant dense<0.000000e+00> : vector<16x256xf32>
    %52 = tpu.matmul %0, %45, %cst_32 {dimension_numbers = #tpu.dot_dimension_numbers<[1], [0], [0], [1], [0, 0, 1, 1], [], []>} : vector<16x8xf32>, vector<8x256xf32>, vector<16x256xf32> -> vector<16x256xf32>
    %cst_33 = arith.constant 1.000000e+00 : f32
    %53 = vector.broadcast %cst_33 : f32 to vector<16x256xf32>
    %54 = arith.addf %52, %53 : vector<16x256xf32>
    %cst_34 = arith.constant dense<0.000000e+00> : vector<16x256xf32>
    %55 = tpu.matmul %1, %45, %cst_34 {dimension_numbers = #tpu.dot_dimension_numbers<[1], [0], [0], [1], [0, 0, 1, 1], [], []>} : vector<16x8xf32>, vector<8x256xf32>, vector<16x256xf32> -> vector<16x256xf32>
    %56 = vector.broadcast %2 : vector<16x1xf32> to vector<16x256xf32>
    %57 = arith.mulf %56, %51 : vector<16x256xf32>
    %cst_35 = arith.constant dense<0.000000e+00> : vector<256xf32>
    %58 = vector.multi_reduction <add>, %57, %cst_35 [0] : vector<16x256xf32> to vector<256xf32>
    %59 = vector.shape_cast %58 : vector<256xf32> to vector<1x256xf32>
    %60 = arith.negf %59 : vector<1x256xf32>
    %61 = math.exp %60 : vector<1x256xf32>
    %cst_36 = arith.constant 1.000000e+00 : f32
    %62 = vector.broadcast %cst_36 : f32 to vector<1x256xf32>
    %63 = arith.addf %62, %61 : vector<1x256xf32>
    %64 = arith.divf %62, %63 : vector<1x256xf32>
    %65 = arith.mulf %51, %54 : vector<16x256xf32>
    %66 = arith.addf %65, %55 : vector<16x256xf32>
    %67 = vector.broadcast %5 : vector<16x1xf32> to vector<16x256xf32>
    %68 = arith.mulf %51, %67 : vector<16x256xf32>
    %69 = vector.broadcast %6 : vector<16x1xf32> to vector<16x256xf32>
    %70 = arith.addf %68, %69 : vector<16x256xf32>
    %cst_37 = arith.constant 1.000000e+00 : f32
    %71 = vector.broadcast %cst_37 : f32 to vector<1x256xf32>
    %72 = arith.subf %71, %64 : vector<1x256xf32>
    %73 = vector.broadcast %72 : vector<1x256xf32> to vector<16x256xf32>
    %74 = arith.mulf %73, %66 : vector<16x256xf32>
    %75 = vector.broadcast %64 : vector<1x256xf32> to vector<16x256xf32>
    %76 = arith.mulf %75, %70 : vector<16x256xf32>
    %77 = arith.addf %74, %76 : vector<16x256xf32>
    %c1_38 = arith.constant 1 : index
    %c0_39 = arith.constant 0 : index
    %c0_40 = arith.constant 0 : index
    %78 = vector.load %arg10[%c1_38, %c0_39, %c0_40] : memref<2x16x256xf32, #tpu.memory_space<vmem>>, vector<1x16x256xf32>
    %79 = vector.shape_cast %78 : vector<1x16x256xf32> to vector<16x256xf32>
    %80 = vector.shape_cast %77 : vector<16x256xf32> to vector<1x16x256xf32>
    tpu.vector_store %arg10[%c1_38, %c0_39, %c0_40], %80 {strides = array<i32>} : memref<2x16x256xf32, #tpu.memory_space<vmem>>, vector<1x16x256xf32>,
    return
  }
  func.func @transform_0(%arg0: i32) -> (i32, i32, i32) {
    %c0_i32 = arith.constant 0 : i32
    %c0_i32_0 = arith.constant 0 : i32
    %c0_i32_1 = arith.constant 0 : i32
    return %arg0, %c0_i32, %c0_i32_0 : i32, i32, i32
  }
  func.func @transform_1(%arg0: i32) -> (i32, i32, i32) {
    %c0_i32 = arith.constant 0 : i32
    %c0_i32_0 = arith.constant 0 : i32
    %c0_i32_1 = arith.constant 0 : i32
    return %arg0, %c0_i32, %c0_i32_0 : i32, i32, i32
  }
  func.func @transform_2(%arg0: i32) -> (i32, i32) {
    %c0_i32 = arith.constant 0 : i32
    %c0_i32_0 = arith.constant 0 : i32
    %c0_i32_1 = arith.constant 0 : i32
    return %c0_i32, %c0_i32_0 : i32, i32
  }
  func.func @transform_3(%arg0: i32) -> (i32, i32) {
    %c0_i32 = arith.constant 0 : i32
    %c0_i32_0 = arith.constant 0 : i32
    %c0_i32_1 = arith.constant 0 : i32
    return %c0_i32, %c0_i32_0 : i32, i32
  }
  func.func @transform_4(%arg0: i32) -> (i32, i32) {
    %c0_i32 = arith.constant 0 : i32
    %c0_i32_0 = arith.constant 0 : i32
    %c0_i32_1 = arith.constant 0 : i32
    return %c0_i32, %c0_i32_0 : i32, i32
  }
  func.func @transform_5(%arg0: i32) -> (i32, i32) {
    %c0_i32 = arith.constant 0 : i32
    %c0_i32_0 = arith.constant 0 : i32
    %c0_i32_1 = arith.constant 0 : i32
    return %c0_i32, %c0_i32_0 : i32, i32
  }
  func.func @transform_6(%arg0: i32) -> (i32, i32) {
    %c0_i32 = arith.constant 0 : i32
    %c0_i32_0 = arith.constant 0 : i32
    %c0_i32_1 = arith.constant 0 : i32
    return %c0_i32, %c0_i32_0 : i32, i32
  }
  func.func @transform_7(%arg0: i32) -> (i32, i32) {
    %c0_i32 = arith.constant 0 : i32
    %c0_i32_0 = arith.constant 0 : i32
    %c0_i32_1 = arith.constant 0 : i32
    return %c0_i32, %c0_i32_0 : i32, i32
  }
  func.func @transform_8(%arg0: i32) -> (i32, i32) {
    %c0_i32 = arith.constant 0 : i32
    %c0_i32_0 = arith.constant 0 : i32
    %c0_i32_1 = arith.constant 0 : i32
    return %c0_i32, %c0_i32_0 : i32, i32
  }
  func.func @transform_9(%arg0: i32) -> (i32, i32, i32) {
    %c0_i32 = arith.constant 0 : i32
    %c0_i32_0 = arith.constant 0 : i32
    %c0_i32_1 = arith.constant 0 : i32
    return %arg0, %c0_i32, %c0_i32_0 : i32, i32, i32
  }
}

</mosaic_0001>

<llo_original>
// kernel: tpu_custom_call.1
$region0: #{tpu_custom_call.1}
  #allocation0 [shape = 'u32[]', space=smem, size = 0x4, offset = 0x4, fixed_abs, tag = 'smem constant byte address 0x4 - core index']
  #allocation1 [shape = 'u32[72,128]{1,0:T(1,128)}', space=vmem, size = 0x9000, scoped, tag = 'internal scratch']
  %s0 = inlined_call_operand.vmem [shape: f32[2,8,256], index: 0, kind: input, shape index: {}]
  %s1 = inlined_call_operand.vmem [shape: f32[2,16,256], index: 1, kind: input, shape index: {}]
  %s2 = inlined_call_operand.vmem [shape: f32[16,8], index: 2, kind: input, shape index: {}]
  %s3 = inlined_call_operand.vmem [shape: f32[16,8], index: 3, kind: input, shape index: {}]
  %s4 = inlined_call_operand.vmem [shape: f32[16,1], index: 4, kind: input, shape index: {}]
  %s5 = inlined_call_operand.vmem [shape: f32[16,1], index: 5, kind: input, shape index: {}]
  %s6 = inlined_call_operand.vmem [shape: f32[16,1], index: 6, kind: input, shape index: {}]
  %s7 = inlined_call_operand.vmem [shape: f32[16,1], index: 7, kind: input, shape index: {}]
  %s8 = inlined_call_operand.vmem [shape: f32[16,1], index: 8, kind: input, shape index: {}]
  %s9 = inlined_call_operand.hbm [shape: f32[2,16,256], index: 9, kind: output, shape index: {}]
  %s10 = sld [smem:[#allocation0]]
  $region46: #{tpu_custom_call.1} parent=0
    _
  %s12 = ssub.s32 1, %s10
  %s13 = scalar_select 0, %s12, %s10
  $region1: #{tpu_custom_call.1} parent=0
    #allocation2 [shape = 'u8[32768]{0}', space=vmem, size = 0x8000, scoped, tag = 'output window, operand 0, single buffered']
    #allocation3 [shape = 's32[1]{0}', space=sflag, size = 0x4, scoped, tag = 'scoped memory for tpu_custom_call.1']
    %14 = vsyncpa [#allocation3], 0
    // Predicated region
    $region2: #{tpu_custom_call.1} parent=1 // pred_check
      _
    $region3: #{tpu_custom_call.1} parent=1 // pred_check_branch
      %16 = sbr.rel (0) target = $region5
    $region4: #{tpu_custom_call.1} parent=1 // pred_region
      _
    $region5: #{tpu_custom_call.1} parent=1 // pred_fallthru
      _
    // Predicated region
    $region6: #{tpu_custom_call.1} parent=1 // pred_check
      _
    $region7: #{tpu_custom_call.1} parent=1 // pred_check_branch
      %18 = sbr.rel (0) target = $region9
    $region8: #{tpu_custom_call.1} parent=1 // pred_region
      _
    $region9: #{tpu_custom_call.1} parent=1 // pred_fallthru
      _
    // Predicated region
    $region10: #{tpu_custom_call.1} parent=1 // pred_check
      _
    $region11: #{tpu_custom_call.1} parent=1 // pred_check_branch
      %20 = sbr.rel (0) target = $region13
    $region12: #{tpu_custom_call.1} parent=1 // pred_region
      _
    $region13: #{tpu_custom_call.1} parent=1 // pred_fallthru
      _
    // Predicated region
    $region14: #{tpu_custom_call.1} parent=1 // pred_check
      _
    $region15: #{tpu_custom_call.1} parent=1 // pred_check_branch
      %22 = sbr.rel (0) target = $region17
    $region16: #{tpu_custom_call.1} parent=1 // pred_region
      _
    $region17: #{tpu_custom_call.1} parent=1 // pred_fallthru
      _
    // Predicated region
    $region18: #{tpu_custom_call.1} parent=1 // pred_check
      _
    $region19: #{tpu_custom_call.1} parent=1 // pred_check_branch
      %24 = sbr.rel (0) target = $region21
    $region20: #{tpu_custom_call.1} parent=1 // pred_region
      _
    $region21: #{tpu_custom_call.1} parent=1 // pred_fallthru
      _
    // Predicated region
    $region22: #{tpu_custom_call.1} parent=1 // pred_check
      _
    $region23: #{tpu_custom_call.1} parent=1 // pred_check_branch
      %26 = sbr.rel (0) target = $region25
    $region24: #{tpu_custom_call.1} parent=1 // pred_region
      _
    $region25: #{tpu_custom_call.1} parent=1 // pred_fallthru
      _
    // Predicated region
    $region26: #{tpu_custom_call.1} parent=1 // pred_check
      _
    $region27: #{tpu_custom_call.1} parent=1 // pred_check_branch
      %28 = sbr.rel (0) target = $region29
    $region28: #{tpu_custom_call.1} parent=1 // pred_region
      _
    $region29: #{tpu_custom_call.1} parent=1 // pred_fallthru
      _
    // Predicated region
    $region30: #{tpu_custom_call.1} parent=1 // pred_check
      _
    $region31: #{tpu_custom_call.1} parent=1 // pred_check_branch
      %30 = sbr.rel (0) target = $region33
    $region32: #{tpu_custom_call.1} parent=1 // pred_region
      _
    $region33: #{tpu_custom_call.1} parent=1 // pred_fallthru
      _
    // Predicated region
    $region34: #{tpu_custom_call.1} parent=1 // pred_check
      _
    $region35: #{tpu_custom_call.1} parent=1 // pred_check_branch
      %32 = sbr.rel (0) target = $region37
    $region36: #{tpu_custom_call.1} parent=1 // pred_region
      _
    $region37: #{tpu_custom_call.1} parent=1 // pred_fallthru
      _
    %v33 = vld [vmem:[%s2] sm:$0xff]
    %v34 = vld [vmem:[%s2 + $0x8] sm:$0xff]
    %v35 = vld [vmem:[%s3] sm:$0xff]
    %v36 = vld [vmem:[%s3 + $0x8] sm:$0xff]
    %v37 = vld [vmem:[%s4] sm:$0xff]
    %v38 = vld [vmem:[%s4 + $0x8] sm:$0xff]
    %v39 = vld [vmem:[%s5] sm:$0xff]
    %v40 = vld [vmem:[%s5 + $0x8] sm:$0xff]
    %v41 = vld [vmem:[%s6] sm:$0xff]
    %v42 = vld [vmem:[%s6 + $0x8] sm:$0xff]
    %v43 = vld [vmem:[%s7] sm:$0xff]
    %v44 = vld [vmem:[%s7 + $0x8] sm:$0xff]
    %v45 = vld [vmem:[%s8] sm:$0xff]
    %v46 = vld [vmem:[%s8 + $0x8] sm:$0xff]
    %v47 = vld [vmem:[%s0] sm:$0xff]
    %v48 = vld [vmem:[%s0 + $0x8] sm:$0xff]
    %v49 = vld [vmem:[%s1] sm:$0xff]
    %v50 = vld [vmem:[%s1 + $0x8] sm:$0xff]
    %v51 = vld [vmem:[%s1 + $0x10] sm:$0xff]
    %v52 = vld [vmem:[%s1 + $0x18] sm:$0xff]
    %54 = vset.pattern.permute.xlu0 0
    %55 = vperm.xlu0 %54, %v39
    %v56 = vpop.permute.xlu0 %55
    %59 = vset.pattern.permute.xlu0 0
    %60 = vperm.xlu0 %59, %v40
    %v61 = vpop.permute.xlu0 %60
    %v63 = vmul.f32 %v49, %v56
    %v64 = vmul.f32 %v50, %v56
    %v65 = vmul.f32 %v51, %v61
    %v66 = vmul.f32 %v52, %v61
    %68 = vset.pattern.permute.xlu0 0
    %69 = vperm.xlu0 %68, %v41
    %v70 = vpop.permute.xlu0 %69
    %73 = vset.pattern.permute.xlu0 0
    %74 = vperm.xlu0 %73, %v42
    %v75 = vpop.permute.xlu0 %74
    %v77 = vadd.f32 %v63, %v70
    %v78 = vadd.f32 %v64, %v70
    %v79 = vadd.f32 %v65, %v75
    %v80 = vadd.f32 %v66, %v75
    %vm81 = vcmask 64512
    %v83 = vsel %vm81, %v33, 0
    %v86 = vsel %vm81, %v34, 0
    %88 = vmatpush.msra.mxu0 0.0
    %89 = vmatpush.msra.mxu0 0.0
    %90 = vmatpush.msra.mxu0 0.0
    %91 = vmatpush.msra.mxu0 0.0
    %92 = vmatpush.msra.mxu0 0.0
    %93 = vmatpush.msra.mxu0 0.0
    %94 = vmatpush.msra.mxu0 0.0
    %95 = vmatpush.msra.mxu0 0.0
    %96 = vmatpush.msra.mxu0 0.0
    %97 = vmatpush.msra.mxu0 0.0
    %98 = vmatpush.msra.mxu0 0.0
    %99 = vmatpush.msra.mxu0 0.0
    %100 = vmatpush.msra.mxu0 0.0
    %101 = vmatpush.msra.mxu0 0.0
    %102 = vmatpush.msra.mxu0 0.0
    %103 = vmatpush.msra.mxu0 %v47
    %104 = vmatmul.f32.gmra.mxu0 %v83
    %v105 = vpop.f32.mrf.mxu0
    %v106 = vadd.f32 1.0, %v105
    %107 = vmatmul.f32.gmra.mxu0 %v86
    %v108 = vpop.f32.mrf.mxu0
    %v109 = vadd.f32 1.0, %v108
    %110 = vdwg.mxu0
    %111 = vmatpush.msra.mxu0 0.0
    %112 = vmatpush.msra.mxu0 0.0
    %113 = vmatpush.msra.mxu0 0.0
    %114 = vmatpush.msra.mxu0 0.0
    %115 = vmatpush.msra.mxu0 0.0
    %116 = vmatpush.msra.mxu0 0.0
    %117 = vmatpush.msra.mxu0 0.0
    %118 = vmatpush.msra.mxu0 0.0
    %119 = vmatpush.msra.mxu0 0.0
    %120 = vmatpush.msra.mxu0 0.0
    %121 = vmatpush.msra.mxu0 0.0
    %122 = vmatpush.msra.mxu0 0.0
    %123 = vmatpush.msra.mxu0 0.0
    %124 = vmatpush.msra.mxu0 0.0
    %125 = vmatpush.msra.mxu0 0.0
    %126 = vmatpush.msra.mxu0 %v48
    %127 = vmatmul.f32.gmra.mxu0 %v83
    %v128 = vpop.f32.mrf.mxu0
    %v129 = vadd.f32 1.0, %v128
    %130 = vmatmul.f32.gmra.mxu0 %v86
    %v131 = vpop.f32.mrf.mxu0
    %v132 = vadd.f32 1.0, %v131
    %133 = vdwg.mxu0
    %v135 = vsel %vm81, %v35, 0
    %v138 = vsel %vm81, %v36, 0
    %140 = vmatpush.msra.mxu0 0.0
    %141 = vmatpush.msra.mxu0 0.0
    %142 = vmatpush.msra.mxu0 0.0
    %143 = vmatpush.msra.mxu0 0.0
    %144 = vmatpush.msra.mxu0 0.0
    %145 = vmatpush.msra.mxu0 0.0
    %146 = vmatpush.msra.mxu0 0.0
    %147 = vmatpush.msra.mxu0 0.0
    %148 = vmatpush.msra.mxu0 0.0
    %149 = vmatpush.msra.mxu0 0.0
    %150 = vmatpush.msra.mxu0 0.0
    %151 = vmatpush.msra.mxu0 0.0
    %152 = vmatpush.msra.mxu0 0.0
    %153 = vmatpush.msra.mxu0 0.0
    %154 = vmatpush.msra.mxu0 0.0
    %155 = vmatpush.msra.mxu0 %v47
    %156 = vmatmul.f32.gmra.mxu0 %v135
    %v157 = vpop.f32.mrf.mxu0
    %v158 = vadd.f32 0.0, %v157
    %159 = vmatmul.f32.gmra.mxu0 %v138
    %v160 = vpop.f32.mrf.mxu0
    %v161 = vadd.f32 0.0, %v160
    %162 = vdwg.mxu0
    %163 = vmatpush.msra.mxu0 0.0
    %164 = vmatpush.msra.mxu0 0.0
    %165 = vmatpush.msra.mxu0 0.0
    %166 = vmatpush.msra.mxu0 0.0
    %167 = vmatpush.msra.mxu0 0.0
    %168 = vmatpush.msra.mxu0 0.0
    %169 = vmatpush.msra.mxu0 0.0
    %170 = vmatpush.msra.mxu0 0.0
    %171 = vmatpush.msra.mxu0 0.0
    %172 = vmatpush.msra.mxu0 0.0
    %173 = vmatpush.msra.mxu0 0.0
    %174 = vmatpush.msra.mxu0 0.0
    %175 = vmatpush.msra.mxu0 0.0
    %176 = vmatpush.msra.mxu0 0.0
    %177 = vmatpush.msra.mxu0 0.0
    %178 = vmatpush.msra.mxu0 %v48
    %179 = vmatmul.f32.gmra.mxu0 %v135
    %v180 = vpop.f32.mrf.mxu0
    %v181 = vadd.f32 0.0, %v180
    %182 = vmatmul.f32.gmra.mxu0 %v138
    %v183 = vpop.f32.mrf.mxu0
    %v184 = vadd.f32 0.0, %v183
    %185 = vdwg.mxu0
    %187 = vset.pattern.permute.xlu0 0
    %188 = vperm.xlu0 %187, %v37
    %v189 = vpop.permute.xlu0 %188
    %192 = vset.pattern.permute.xlu0 0
    %193 = vperm.xlu0 %192, %v38
    %v194 = vpop.permute.xlu0 %193
    %v196 = vmul.f32 %v189, %v77
    %v197 = vmul.f32 %v189, %v78
    %v198 = vmul.f32 %v194, %v79
    %v199 = vmul.f32 %v194, %v80
    %v200 = vadd.f32 %v196, %v198
    %v201 = vrot.slane %v200, 4
    %v202 = vadd.f32 %v200, %v201
    %v203 = vrot.slane %v202, 2
    %v204 = vadd.f32 %v202, %v203
    %v205 = vrot.slane %v204, 1
    %v206 = vadd.f32 %v204, %v205
    %v207 = vadd.f32 %v197, %v199
    %v208 = vrot.slane %v207, 4
    %v209 = vadd.f32 %v207, %v208
    %v210 = vrot.slane %v209, 2
    %v211 = vadd.f32 %v209, %v210
    %v212 = vrot.slane %v211, 1
    %v213 = vadd.f32 %v211, %v212
    %v214 = vxor.u32 %v206, 2147483648
    %v215 = vxor.u32 %v213, 2147483648
    %v216 = vmul.f32 %v214, 1.442695
    %v217 = vpow.pop %v216
    %v218 = vmul.f32 %v215, 1.442695
    %v219 = vpow.pop %v218
    %v220 = vadd.f32 %v217, 1.0
    %v221 = vadd.f32 %v219, 1.0
    %v222 = vrcp.pop %v220
    %v223 = vmul.f32 %v220, %v222
    %v224 = vsub.f32 1.0, %v223
    %v225 = vmul.f32 %v222, %v224
    %v226 = vadd.f32 %v222, %v225
    %vm227 = vweird.f32 %v220
    %vm228 = vweird.f32 %v222
    %vm229 = vmor %vm227, %vm228
    %v230 = vsel %vm229, %v222, %v226
    %v231 = vand.u32 2147483647, %v220
    %vm232 = vcmp.eq.f32.partialorder %v231, 8.507059e+37
    %v233 = vand.u32 %v220, 2147483648
    %v234 = vor.u32 1.1754944e-38, %v233
    %v235 = vsel %vm232, %v234, %v230
    %v236 = vmul.f32 1.0, %v235
    %v237 = vrcp.pop %v221
    %v238 = vmul.f32 %v221, %v237
    %v239 = vsub.f32 1.0, %v238
    %v240 = vmul.f32 %v237, %v239
    %v241 = vadd.f32 %v237, %v240
    %vm242 = vweird.f32 %v221
    %vm243 = vweird.f32 %v237
    %vm244 = vmor %vm242, %vm243
    %v245 = vsel %vm244, %v237, %v241
    %v246 = vand.u32 2147483647, %v221
    %vm247 = vcmp.eq.f32.partialorder %v246, 8.507059e+37
    %v248 = vand.u32 %v221, 2147483648
    %v249 = vor.u32 1.1754944e-38, %v248
    %v250 = vsel %vm247, %v249, %v245
    %v251 = vmul.f32 1.0, %v250
    %v252 = vmul.f32 %v77, %v106
    %v253 = vmul.f32 %v78, %v129
    %v254 = vmul.f32 %v79, %v109
    %v255 = vmul.f32 %v80, %v132
    %v256 = vadd.f32 %v252, %v158
    %v257 = vadd.f32 %v253, %v181
    %v258 = vadd.f32 %v254, %v161
    %v259 = vadd.f32 %v255, %v184
    %261 = vset.pattern.permute.xlu0 0
    %262 = vperm.xlu0 %261, %v43
    %v263 = vpop.permute.xlu0 %262
    %266 = vset.pattern.permute.xlu0 0
    %267 = vperm.xlu0 %266, %v44
    %v268 = vpop.permute.xlu0 %267
    %v270 = vmul.f32 %v77, %v263
    %v271 = vmul.f32 %v78, %v263
    %v272 = vmul.f32 %v79, %v268
    %v273 = vmul.f32 %v80, %v268
    %275 = vset.pattern.permute.xlu0 0
    %276 = vperm.xlu0 %275, %v45
    %v277 = vpop.permute.xlu0 %276
    %280 = vset.pattern.permute.xlu0 0
    %281 = vperm.xlu0 %280, %v46
    %v282 = vpop.permute.xlu0 %281
    %v284 = vadd.f32 %v270, %v277
    %v285 = vadd.f32 %v271, %v277
    %v286 = vadd.f32 %v272, %v282
    %v287 = vadd.f32 %v273, %v282
    %v288 = vsub.f32 1.0, %v236
    %v289 = vsub.f32 1.0, %v251
    %v290 = vmul.f32 %v288, %v256
    %v291 = vmul.f32 %v289, %v257
    %v292 = vmul.f32 %v288, %v258
    %v293 = vmul.f32 %v289, %v259
    %v294 = vmul.f32 %v236, %v284
    %v295 = vmul.f32 %v251, %v285
    %v296 = vmul.f32 %v236, %v286
    %v297 = vmul.f32 %v251, %v287
    %v298 = vadd.f32 %v290, %v294
    %v299 = vadd.f32 %v291, %v295
    %v300 = vadd.f32 %v292, %v296
    %v301 = vadd.f32 %v293, %v297
    %302 = vst [vmem:[#allocation2] sm:$0xff] %v298
    %303 = vst [vmem:[#allocation2 + $0x8] sm:$0xff] %v299
    %304 = vst [vmem:[#allocation2 + $0x10] sm:$0xff] %v300
    %305 = vst [vmem:[#allocation2 + $0x18] sm:$0xff] %v301
    %s306 = scalar_lea.vmem %s0, 16
    %v307 = vld [vmem:[%s306] sm:$0xff]
    %v308 = vld [vmem:[%s306 + $0x8] sm:$0xff]
    %s309 = scalar_lea.vmem %s1, 32
    %v310 = vld [vmem:[%s309] sm:$0xff]
    %v311 = vld [vmem:[%s309 + $0x8] sm:$0xff]
    %v312 = vld [vmem:[%s309 + $0x10] sm:$0xff]
    %v313 = vld [vmem:[%s309 + $0x18] sm:$0xff]
    %v314 = vmul.f32 %v310, %v56
    %v315 = vmul.f32 %v311, %v56
    %v316 = vmul.f32 %v312, %v61
    %v317 = vmul.f32 %v313, %v61
    %v318 = vadd.f32 %v314, %v70
    %v319 = vadd.f32 %v315, %v70
    %v320 = vadd.f32 %v316, %v75
    %v321 = vadd.f32 %v317, %v75
    %322 = vmatpush.msra.mxu0 0.0
    %323 = vmatpush.msra.mxu0 0.0
    %324 = vmatpush.msra.mxu0 0.0
    %325 = vmatpush.msra.mxu0 0.0
    %326 = vmatpush.msra.mxu0 0.0
    %327 = vmatpush.msra.mxu0 0.0
    %328 = vmatpush.msra.mxu0 0.0
    %329 = vmatpush.msra.mxu0 0.0
    %330 = vmatpush.msra.mxu0 0.0
    %331 = vmatpush.msra.mxu0 0.0
    %332 = vmatpush.msra.mxu0 0.0
    %333 = vmatpush.msra.mxu0 0.0
    %334 = vmatpush.msra.mxu0 0.0
    %335 = vmatpush.msra.mxu0 0.0
    %336 = vmatpush.msra.mxu0 0.0
    %337 = vmatpush.msra.mxu0 %v307
    %338 = vmatmul.f32.gmra.mxu0 %v83
    %v339 = vpop.f32.mrf.mxu0
    %v340 = vadd.f32 1.0, %v339
    %341 = vmatmul.f32.gmra.mxu0 %v86
    %v342 = vpop.f32.mrf.mxu0
    %v343 = vadd.f32 1.0, %v342
    %344 = vdwg.mxu0
    %345 = vmatpush.msra.mxu0 0.0
    %346 = vmatpush.msra.mxu0 0.0
    %347 = vmatpush.msra.mxu0 0.0
    %348 = vmatpush.msra.mxu0 0.0
    %349 = vmatpush.msra.mxu0 0.0
    %350 = vmatpush.msra.mxu0 0.0
    %351 = vmatpush.msra.mxu0 0.0
    %352 = vmatpush.msra.mxu0 0.0
    %353 = vmatpush.msra.mxu0 0.0
    %354 = vmatpush.msra.mxu0 0.0
    %355 = vmatpush.msra.mxu0 0.0
    %356 = vmatpush.msra.mxu0 0.0
    %357 = vmatpush.msra.mxu0 0.0
    %358 = vmatpush.msra.mxu0 0.0
    %359 = vmatpush.msra.mxu0 0.0
    %360 = vmatpush.msra.mxu0 %v308
    %361 = vmatmul.f32.gmra.mxu0 %v83
    %v362 = vpop.f32.mrf.mxu0
    %v363 = vadd.f32 1.0, %v362
    %364 = vmatmul.f32.gmra.mxu0 %v86
    %v365 = vpop.f32.mrf.mxu0
    %v366 = vadd.f32 1.0, %v365
    %367 = vdwg.mxu0
    %368 = vmatpush.msra.mxu0 0.0
    %369 = vmatpush.msra.mxu0 0.0
    %370 = vmatpush.msra.mxu0 0.0
    %371 = vmatpush.msra.mxu0 0.0
    %372 = vmatpush.msra.mxu0 0.0
    %373 = vmatpush.msra.mxu0 0.0
    %374 = vmatpush.msra.mxu0 0.0
    %375 = vmatpush.msra.mxu0 0.0
    %376 = vmatpush.msra.mxu0 0.0
    %377 = vmatpush.msra.mxu0 0.0
    %378 = vmatpush.msra.mxu0 0.0
    %379 = vmatpush.msra.mxu0 0.0
    %380 = vmatpush.msra.mxu0 0.0
    %381 = vmatpush.msra.mxu0 0.0
    %382 = vmatpush.msra.mxu0 0.0
    %383 = vmatpush.msra.mxu0 %v307
    %384 = vmatmul.f32.gmra.mxu0 %v135
    %v385 = vpop.f32.mrf.mxu0
    %v386 = vadd.f32 0.0, %v385
    %387 = vmatmul.f32.gmra.mxu0 %v138
    %v388 = vpop.f32.mrf.mxu0
    %v389 = vadd.f32 0.0, %v388
    %390 = vdwg.mxu0
    %391 = vmatpush.msra.mxu0 0.0
    %392 = vmatpush.msra.mxu0 0.0
    %393 = vmatpush.msra.mxu0 0.0
    %394 = vmatpush.msra.mxu0 0.0
    %395 = vmatpush.msra.mxu0 0.0
    %396 = vmatpush.msra.mxu0 0.0
    %397 = vmatpush.msra.mxu0 0.0
    %398 = vmatpush.msra.mxu0 0.0
    %399 = vmatpush.msra.mxu0 0.0
    %400 = vmatpush.msra.mxu0 0.0
    %401 = vmatpush.msra.mxu0 0.0
    %402 = vmatpush.msra.mxu0 0.0
    %403 = vmatpush.msra.mxu0 0.0
    %404 = vmatpush.msra.mxu0 0.0
    %405 = vmatpush.msra.mxu0 0.0
    %406 = vmatpush.msra.mxu0 %v308
    %407 = vmatmul.f32.gmra.mxu0 %v135
    %v408 = vpop.f32.mrf.mxu0
    %v409 = vadd.f32 0.0, %v408
    %410 = vmatmul.f32.gmra.mxu0 %v138
    %v411 = vpop.f32.mrf.mxu0
    %v412 = vadd.f32 0.0, %v411
    %413 = vdwg.mxu0
    %v414 = vmul.f32 %v189, %v318
    %v415 = vmul.f32 %v189, %v319
    %v416 = vmul.f32 %v194, %v320
    %v417 = vmul.f32 %v194, %v321
    %v418 = vadd.f32 %v414, %v416
    %v419 = vrot.slane %v418, 4
    %v420 = vadd.f32 %v418, %v419
    %v421 = vrot.slane %v420, 2
    %v422 = vadd.f32 %v420, %v421
    %v423 = vrot.slane %v422, 1
    %v424 = vadd.f32 %v422, %v423
    %v425 = vadd.f32 %v415, %v417
    %v426 = vrot.slane %v425, 4
    %v427 = vadd.f32 %v425, %v426
    %v428 = vrot.slane %v427, 2
    %v429 = vadd.f32 %v427, %v428
    %v430 = vrot.slane %v429, 1
    %v431 = vadd.f32 %v429, %v430
    %v432 = vxor.u32 %v424, 2147483648
    %v433 = vxor.u32 %v431, 2147483648
    %v434 = vmul.f32 %v432, 1.442695
    %v435 = vpow.pop %v434
    %v436 = vmul.f32 %v433, 1.442695
    %v437 = vpow.pop %v436
    %v438 = vadd.f32 %v435, 1.0
    %v439 = vadd.f32 %v437, 1.0
    %v440 = vrcp.pop %v438
    %v441 = vmul.f32 %v438, %v440
    %v442 = vsub.f32 1.0, %v441
    %v443 = vmul.f32 %v440, %v442
    %v444 = vadd.f32 %v440, %v443
    %vm445 = vweird.f32 %v438
    %vm446 = vweird.f32 %v440
    %vm447 = vmor %vm445, %vm446
    %v448 = vsel %vm447, %v440, %v444
    %v449 = vand.u32 2147483647, %v438
    %vm450 = vcmp.eq.f32.partialorder %v449, 8.507059e+37
    %v451 = vand.u32 %v438, 2147483648
    %v452 = vor.u32 1.1754944e-38, %v451
    %v453 = vsel %vm450, %v452, %v448
    %v454 = vmul.f32 1.0, %v453
    %v455 = vrcp.pop %v439
    %v456 = vmul.f32 %v439, %v455
    %v457 = vsub.f32 1.0, %v456
    %v458 = vmul.f32 %v455, %v457
    %v459 = vadd.f32 %v455, %v458
    %vm460 = vweird.f32 %v439
    %vm461 = vweird.f32 %v455
    %vm462 = vmor %vm460, %vm461
    %v463 = vsel %vm462, %v455, %v459
    %v464 = vand.u32 2147483647, %v439
    %vm465 = vcmp.eq.f32.partialorder %v464, 8.507059e+37
    %v466 = vand.u32 %v439, 2147483648
    %v467 = vor.u32 1.1754944e-38, %v466
    %v468 = vsel %vm465, %v467, %v463
    %v469 = vmul.f32 1.0, %v468
    %v470 = vmul.f32 %v318, %v340
    %v471 = vmul.f32 %v319, %v363
    %v472 = vmul.f32 %v320, %v343
    %v473 = vmul.f32 %v321, %v366
    %v474 = vadd.f32 %v470, %v386
    %v475 = vadd.f32 %v471, %v409
    %v476 = vadd.f32 %v472, %v389
    %v477 = vadd.f32 %v473, %v412
    %v478 = vmul.f32 %v318, %v263
    %v479 = vmul.f32 %v319, %v263
    %v480 = vmul.f32 %v320, %v268
    %v481 = vmul.f32 %v321, %v268
    %v482 = vadd.f32 %v478, %v277
    %v483 = vadd.f32 %v479, %v277
    %v484 = vadd.f32 %v480, %v282
    %v485 = vadd.f32 %v481, %v282
    %v486 = vsub.f32 1.0, %v454
    %v487 = vsub.f32 1.0, %v469
    %v488 = vmul.f32 %v486, %v474
    %v489 = vmul.f32 %v487, %v475
    %v490 = vmul.f32 %v486, %v476
    %v491 = vmul.f32 %v487, %v477
    %v492 = vmul.f32 %v454, %v482
    %v493 = vmul.f32 %v469, %v483
    %v494 = vmul.f32 %v454, %v484
    %v495 = vmul.f32 %v469, %v485
    %v496 = vadd.f32 %v488, %v492
    %v497 = vadd.f32 %v489, %v493
    %v498 = vadd.f32 %v490, %v494
    %v499 = vadd.f32 %v491, %v495
    %s500 = scalar_lea.vmem [#allocation2], 32
    %501 = vst [vmem:[%s500] sm:$0xff] %v496
    %502 = vst [vmem:[%s500 + $0x8] sm:$0xff] %v497
    %503 = vst [vmem:[%s500 + $0x10] sm:$0xff] %v498
    %504 = vst [vmem:[%s500 + $0x18] sm:$0xff] %v499
    // Predicated region
    $region38: #{tpu_custom_call.1} parent=1 // pred_check
      _
    $region39: #{tpu_custom_call.1} parent=1 // pred_check_branch
      %506 = sbr.rel (0) target = $region41
    $region40: #{tpu_custom_call.1} parent=1 // pred_region
      %508 = vsyncadd [#allocation3], 0
      %s509 = sshll.u32 [#allocation2], 4
      %s510 = int_to_ptr.vmem [resolvable:$true] %s509
      %s511 = sshll.u32 %s9, 4
      %s512 = int_to_ptr.hbm [resolvable:$true] %s511
      %517 = dma.vmem_to_hbm [thread:$0]  %s510, 1024, %s512, [#allocation3], 256, 256, 16
    $region41: #{tpu_custom_call.1} parent=1 // pred_fallthru
      _
    // Predicated region
    $region42: #{tpu_custom_call.1} parent=1 // pred_check
      _
    $region43: #{tpu_custom_call.1} parent=1 // pred_check_branch
      %519 = sbr.rel (0) target = $region45
    $region44: #{tpu_custom_call.1} parent=1 // pred_region
      %521 = dma.done [#allocation3], 1024
    $region45: #{tpu_custom_call.1} parent=1 // pred_fallthru
      _
    %522 = vsyncpa [#allocation3], 1

</llo_original>
